<compile_context>
chip_gen: v5e
topology: v5e:2x2
jax: 0.10.0
libtpu: 0.0.40
codegen_flags: <defaults>
</compile_context>

<pallas_src>
import jax
import jax.numpy as jnp
import numpy as np
from jax.experimental import pallas as pl
from jax.experimental.pallas import tpu as pltpu


# ----------------------------- Pallas kernel --------------------------------
def decoder_kernel(xh_ref, c0_ref, enc_ref, sdist_ref,
                   w1_ref, b1_ref, wenc_ref, vrep_ref, wfh_ref, bf_ref,
                   pred_ref, h_ref, c_ref, attn_ref):
    B, S, EH = enc_ref.shape
    E = sdist_ref.shape[1]
    H = c0_ref.shape[1]
    OUT = wfh_ref.shape[1]

    # --- fused matmul 1: LSTM gates (4H) + attention hidden projection (H) --
    big = (jnp.dot(xh_ref[...], w1_ref[...], preferred_element_type=jnp.float32)
           + b1_ref[...])                                   # (B, 5H)
    gates = big[:, :4 * H]                                  # (B, 4H)
    hid_proj = big[:, 4 * H:]                               # (B, H)  (attn bias folded)

    # --- fused matmul 2: encoder-side projections ----------------------------
    #   columns 0:H      -> attention encoder projection
    #   columns H:H+OUT  -> fc_out context-path projection (enc @ Wc)
    enc_big = jnp.dot(enc_ref[...].reshape(B * S, EH), wenc_ref[...],
                      preferred_element_type=jnp.float32)   # (B*S, H+OUT)
    enc_proj = enc_big[:, :H].reshape(B, S, H)              # (B, S, H)
    enc_out = enc_big[:, H:].reshape(B, S, OUT)             # (B, S, OUT)

    # --- SpatialAttention -----------------------------------------------------
    energy = jnp.tanh(hid_proj[:, None, :] + enc_proj)      # (B, S, H)
    # score broadcast across E done on the MXU via replicated v columns
    adj = (jnp.dot(energy.reshape(B * S, H), vrep_ref[...],
                   preferred_element_type=jnp.float32).reshape(B, S, E)
           - sdist_ref[...][None, :, :])                    # (B, S, E)

    # softmax over the sequence dimension (dim=1)
    m = jnp.max(adj, axis=1, keepdims=True)
    ex = jnp.exp(adj - m)
    attn = ex / jnp.sum(ex, axis=1, keepdims=True)          # (B, S, E)
    attn_ref[...] = attn.reshape(B, S * E)                  # lane-dense store

    # --- LSTM cell (num_layers=1, seq_len=1) ---------------------------------
    # TODO(synk): multi-layer LSTM (num_layers > 1) would need a loop over layers.
    i_g = jax.nn.sigmoid(gates[:, 0 * H:1 * H])
    f_g = jax.nn.sigmoid(gates[:, 1 * H:2 * H])
    g_g = jnp.tanh(gates[:, 2 * H:3 * H])
    o_g = jax.nn.sigmoid(gates[:, 3 * H:4 * H])
    c_new = f_g * c0_ref[...] + i_g * g_g
    h_new = o_g * jnp.tanh(c_new)
    c_ref[...] = c_new
    h_ref[...] = h_new

    # --- fc_out ---------------------------------------------------------------
    # context path: attn (B,S,E) contracted with enc_out (B,S,OUT) over S
    pred_ctx = jax.lax.dot_general(
        attn, enc_out,
        dimension_numbers=(((1,), (1,)), ((0,), (0,))),
        preferred_element_type=jnp.float32)                 # (B, E, OUT)
    # hidden path: computed once per batch row (not E times) + bias
    pred_h = (jnp.dot(h_new, wfh_ref[...], preferred_element_type=jnp.float32)
              + bf_ref[...])                                # (B, OUT)
    pred = pred_ctx + pred_h[:, None, :]                    # (B, E, OUT)
    pred_ref[...] = pred.reshape(B, E * OUT)                # lane-dense store


# ------------------------------- wrapper -------------------------------------
def decoder_forward(params, inp, hidden, cell, encoder_outputs, distance_matrix,
                    eeg_output_dim, eeg_channels):
    B, S, ENC_H = encoder_outputs.shape
    H = hidden.shape[-1]
    OUT = eeg_output_dim
    E = eeg_channels
    IN_DIM = inp.shape[-1]
    f32 = jnp.float32

    # glue: operand / parameter re-layouts (all fused, pre-transposed)
    x = inp[:, 0, :]                                   # (B, IN_DIM)  seq_len == 1
    h0 = hidden[-1]                                    # (B, H)
    c0 = cell[-1]                                      # (B, H)
    xh = jnp.concatenate([x, h0], axis=-1)             # (B, IN_DIM + H)

    attn_w, attn_b = params["attn_w"], params["attn_b"]
    wah_t = attn_w[:, :H].T                            # hidden part  (H, H)
    wae_t = attn_w[:, H:].T                            # encoder part (ENC_H, H)

    # fused weight 1: columns 0:4H -> LSTM gates, 4H:5H -> attention hidden proj
    w1 = jnp.zeros((IN_DIM + H, 5 * H), f32)
    w1 = w1.at[:IN_DIM, :4 * H].set(params["w_ih"].T)
    w1 = w1.at[IN_DIM:, :4 * H].set(params["w_hh"].T)
    w1 = w1.at[IN_DIM:, 4 * H:].set(wah_t)
    b1 = jnp.concatenate([params["b_ih"] + params["b_hh"], attn_b])[None, :]  # (1, 5H)

    # fused weight 2: columns 0:H -> attention enc proj, H:H+OUT -> fc_out ctx proj
    wf_h = params["fc_w"][:, :H].T                     # (H, OUT)
    wf_c = params["fc_w"][:, H:].T                     # (ENC_H, OUT)
    w_enc = jnp.concatenate([wae_t, wf_c], axis=1)     # (ENC_H, H + OUT)

    v_rep = jnp.broadcast_to(params["v_w"].T, (H, E))  # (H, E) replicated columns
    sdist = params["lam"] * distance_matrix            # loop-invariant, hoisted
    bf = params["fc_b"][None, :]                       # (1, OUT)

    vmem = pl.BlockSpec(memory_space=pltpu.MemorySpace.VMEM)

    pred_flat, h_new, c_new, attn_flat = pl.pallas_call(
        decoder_kernel,
        out_shape=(
            jax.ShapeDtypeStruct((B, E * OUT), f32),   # lane-dense pred slab
            jax.ShapeDtypeStruct((B, H), f32),
            jax.ShapeDtypeStruct((B, H), f32),
            jax.ShapeDtypeStruct((B, S * E), f32),     # lane-dense attn slab
        ),
        in_specs=[vmem] * 10,
        out_specs=(vmem, vmem, vmem, vmem),
    )(xh, c0, encoder_outputs, sdist,
      w1, b1, w_enc, v_rep, wf_h, bf)

    attn = attn_flat.reshape(B, S, E)
    pred3 = pred_flat.reshape(B, E, OUT)
    hidden_new = h_new[None, :, :]
    cell_new = c_new[None, :, :]
    if OUT == 1:
        prediction = pred3[:, :, 0]
    else:
        # exact torch semantics: raw reshape (B, E, OUT) -> (B, OUT, E)
        prediction = pred3.reshape(-1, OUT, E)
    return prediction, hidden_new, cell_new, attn


# --------------------------- pure-JAX reference -------------------------------
def decoder_reference(params, inp, hidden, cell, enc, dist, eeg_output_dim, eeg_channels):
    B, S, _ = enc.shape
    H = hidden.shape[-1]
    h_last = hidden[-1]
    hrep = jnp.repeat(h_last[:, None, :], S, axis=1)
    cat = jnp.concatenate([hrep, enc], axis=2)
    energy = jnp.tanh(cat @ params["attn_w"].T + params["attn_b"])
    score = (energy @ params["v_w"].T)[..., 0]
    adj = score[:, :, None] - params["lam"] * dist[None, :, :]
    attn = jax.nn.softmax(adj, axis=1)
    context = jnp.einsum("bse,bsh->beh", attn, enc)

    x = inp[:, 0, :]
    gates = (x @ params["w_ih"].T + h_last @ params["w_hh"].T
             + params["b_ih"] + params["b_hh"])
    i_g = jax.nn.sigmoid(gates[:, :H])
    f_g = jax.nn.sigmoid(gates[:, H:2 * H])
    g_g = jnp.tanh(gates[:, 2 * H:3 * H])
    o_g = jax.nn.sigmoid(gates[:, 3 * H:])
    c_new = f_g * cell[-1] + i_g * g_g
    h_new = o_g * jnp.tanh(c_new)

    out_exp = jnp.repeat(h_new[:, None, :], eeg_channels, axis=1)
    comb = jnp.concatenate([out_exp, context], axis=2)
    pred = comb @ params["fc_w"].T + params["fc_b"]
    if eeg_output_dim == 1:
        pred = pred[..., 0]
    else:
        pred = pred.reshape(-1, eeg_output_dim, eeg_channels)
    return pred, h_new[None], c_new[None], attn


# --------------------------------- main ---------------------------------------
if __name__ == "__main__":
    B = 2
    ENC_H = 32          # encoder_hidden_size
    DEC_H = 32          # decoder_hidden_size
    NIRS_C = 4          # nirs_channels (unused in forward math)
    S = 8               # nirs_seq_len == encoder_outputs seq len
    E = 4               # eeg_channels
    OUT = 2             # eeg_output_dim
    IN_DIM = OUT * E    # LSTM input size

    key = jax.random.PRNGKey(0)
    ks = jax.random.split(key, 16)
    f32 = jnp.float32

    params = {
        "attn_w": 0.1 * jax.random.normal(ks[0], (DEC_H, ENC_H + DEC_H), f32),
        "attn_b": 0.1 * jax.random.normal(ks[1], (DEC_H,), f32),
        "v_w":    0.1 * jax.random.normal(ks[2], (1, DEC_H), f32),
        "lam":    jnp.float32(1.0),
        "w_ih":   0.1 * jax.random.normal(ks[3], (4 * DEC_H, IN_DIM), f32),
        "w_hh":   0.1 * jax.random.normal(ks[4], (4 * DEC_H, DEC_H), f32),
        "b_ih":   0.1 * jax.random.normal(ks[5], (4 * DEC_H,), f32),
        "b_hh":   0.1 * jax.random.normal(ks[6], (4 * DEC_H,), f32),
        "fc_w":   0.1 * jax.random.normal(ks[7], (OUT, DEC_H + ENC_H), f32),
        "fc_b":   0.1 * jax.random.normal(ks[8], (OUT,), f32),
    }

    inp = jax.random.normal(ks[9], (B, 1, IN_DIM), f32)
    hidden = jax.random.normal(ks[10], (1, B, DEC_H), f32)
    cell = jax.random.normal(ks[11], (1, B, DEC_H), f32)
    encoder_outputs = jax.random.normal(ks[12], (B, S, ENC_H), f32)
    distance_matrix = jnp.abs(jax.random.normal(ks[13], (S, E), f32))

    outs = decoder_forward(params, inp, hidden, cell, encoder_outputs,
                           distance_matrix, OUT, E)
    outs = jax.block_until_ready(outs)

    refs = decoder_reference(params, inp, hidden, cell, encoder_outputs,
                             distance_matrix, OUT, E)
    for o, r in zip(outs, refs):
        np.testing.assert_allclose(np.asarray(o), np.asarray(r), rtol=1e-5, atol=1e-5)

    print("KERNEL_OK")
</pallas_src>

<mosaic_0001>
module attributes {stable_mosaic.version = 11 : i64} {
  func.func @decoder_kernel(%arg0: memref<2x40xf32, #tpu.memory_space<vmem>>, %arg1: memref<2x32xf32, #tpu.memory_space<vmem>>, %arg2: memref<2x8x32xf32, #tpu.memory_space<vmem>>, %arg3: memref<8x4xf32, #tpu.memory_space<vmem>>, %arg4: memref<40x160xf32, #tpu.memory_space<vmem>>, %arg5: memref<1x160xf32, #tpu.memory_space<vmem>>, %arg6: memref<32x34xf32, #tpu.memory_space<vmem>>, %arg7: memref<32x4xf32, #tpu.memory_space<vmem>>, %arg8: memref<32x2xf32, #tpu.memory_space<vmem>>, %arg9: memref<1x2xf32, #tpu.memory_space<vmem>>, %arg10: memref<2x8xf32, #tpu.memory_space<vmem>>, %arg11: memref<2x32xf32, #tpu.memory_space<vmem>>, %arg12: memref<2x32xf32, #tpu.memory_space<vmem>>, %arg13: memref<2x32xf32, #tpu.memory_space<vmem>>) attributes {dimension_semantics = [], scalar_prefetch = 0 : i64, scratch_operands = 0 : i64, tpu.core_type = #tpu.core_type<tc>} {
    %c0 = arith.constant 0 : index
    %c0_0 = arith.constant 0 : index
    %0 = vector.load %arg0[%c0, %c0_0] : memref<2x40xf32, #tpu.memory_space<vmem>>, vector<2x40xf32>
    %c0_1 = arith.constant 0 : index
    %c0_2 = arith.constant 0 : index
    %1 = vector.load %arg4[%c0_1, %c0_2] : memref<40x160xf32, #tpu.memory_space<vmem>>, vector<40x160xf32>
    %cst = arith.constant dense<0.000000e+00> : vector<2x160xf32>
    %2 = tpu.matmul %0, %1, %cst {dimension_numbers = #tpu.dot_dimension_numbers<[1], [0], [0], [1], [0, 0, 1, 1], [], []>} : vector<2x40xf32>, vector<40x160xf32>, vector<2x160xf32> -> vector<2x160xf32>
    %c0_3 = arith.constant 0 : index
    %c0_4 = arith.constant 0 : index
    %3 = vector.load %arg5[%c0_3, %c0_4] : memref<1x160xf32, #tpu.memory_space<vmem>>, vector<1x160xf32>
    %4 = vector.broadcast %3 : vector<1x160xf32> to vector<2x160xf32>
    %5 = arith.addf %2, %4 : vector<2x160xf32>
    %6 = vector.extract_strided_slice %5 {offsets = [0, 0], sizes = [2, 128], strides = [1, 1]} : vector<2x160xf32> to vector<2x128xf32>
    %7 = vector.extract_strided_slice %5 {offsets = [0, 128], sizes = [2, 32], strides = [1, 1]} : vector<2x160xf32> to vector<2x32xf32>
    %c0_5 = arith.constant 0 : index
    %c0_6 = arith.constant 0 : index
    %c0_7 = arith.constant 0 : index
    %8 = vector.load %arg2[%c0_5, %c0_6, %c0_7] : memref<2x8x32xf32, #tpu.memory_space<vmem>>, vector<2x8x32xf32>
    %9 = vector.shape_cast %8 : vector<2x8x32xf32> to vector<16x32xf32>
    %c0_8 = arith.constant 0 : index
    %c0_9 = arith.constant 0 : index
    %10 = vector.load %arg6[%c0_8, %c0_9] : memref<32x34xf32, #tpu.memory_space<vmem>>, vector<32x34xf32>
    %cst_10 = arith.constant dense<0.000000e+00> : vector<16x34xf32>
    %11 = tpu.matmul %9, %10, %cst_10 {dimension_numbers = #tpu.dot_dimension_numbers<[1], [0], [0], [1], [0, 0, 1, 1], [], []>} : vector<16x32xf32>, vector<32x34xf32>, vector<16x34xf32> -> vector<16x34xf32>
    %12 = vector.extract_strided_slice %11 {offsets = [0, 0], sizes = [16, 32], strides = [1, 1]} : vector<16x34xf32> to vector<16x32xf32>
    %13 = vector.shape_cast %12 : vector<16x32xf32> to vector<2x8x32xf32>
    %14 = vector.extract_strided_slice %11 {offsets = [0, 32], sizes = [16, 2], strides = [1, 1]} : vector<16x34xf32> to vector<16x2xf32>
    %15 = vector.shape_cast %14 : vector<16x2xf32> to vector<2x8x2xf32>
    %16 = vector.shape_cast %7 : vector<2x32xf32> to vector<2x1x32xf32>
    %17 = vector.broadcast %16 : vector<2x1x32xf32> to vector<2x8x32xf32>
    %18 = arith.addf %17, %13 : vector<2x8x32xf32>
    %19 = math.tanh %18 : vector<2x8x32xf32>
    %20 = vector.shape_cast %19 : vector<2x8x32xf32> to vector<16x32xf32>
    %c0_11 = arith.constant 0 : index
    %c0_12 = arith.constant 0 : index
    %21 = vector.load %arg7[%c0_11, %c0_12] : memref<32x4xf32, #tpu.memory_space<vmem>>, vector<32x4xf32>
    %cst_13 = arith.constant dense<0.000000e+00> : vector<16x4xf32>
    %22 = tpu.matmul %20, %21, %cst_13 {dimension_numbers = #tpu.dot_dimension_numbers<[1], [0], [0], [1], [0, 0, 1, 1], [], []>} : vector<16x32xf32>, vector<32x4xf32>, vector<16x4xf32> -> vector<16x4xf32>
    %23 = vector.shape_cast %22 : vector<16x4xf32> to vector<2x8x4xf32>
    %c0_14 = arith.constant 0 : index
    %c0_15 = arith.constant 0 : index
    %24 = vector.load %arg3[%c0_14, %c0_15] : memref<8x4xf32, #tpu.memory_space<vmem>>, vector<8x4xf32>
    %25 = vector.shape_cast %24 : vector<8x4xf32> to vector<1x8x4xf32>
    %26 = vector.broadcast %25 : vector<1x8x4xf32> to vector<2x8x4xf32>
    %27 = arith.subf %23, %26 : vector<2x8x4xf32>
    %cst_16 = arith.constant dense<0xFF800000> : vector<2x4xf32>
    %28 = vector.multi_reduction <maximumf>, %27, %cst_16 [1] : vector<2x8x4xf32> to vector<2x4xf32>
    %29 = vector.shape_cast %28 : vector<2x4xf32> to vector<2x1x4xf32>
    %30 = vector.broadcast %29 : vector<2x1x4xf32> to vector<2x8x4xf32>
    %31 = arith.subf %27, %30 : vector<2x8x4xf32>
    %32 = math.exp %31 : vector<2x8x4xf32>
    %cst_17 = arith.constant dense<0.000000e+00> : vector<2x4xf32>
    %33 = vector.multi_reduction <add>, %32, %cst_17 [1] : vector<2x8x4xf32> to vector<2x4xf32>
    %34 = vector.shape_cast %33 : vector<2x4xf32> to vector<2x1x4xf32>
    %35 = vector.broadcast %34 : vector<2x1x4xf32> to vector<2x8x4xf32>
    %36 = arith.divf %32, %35 : vector<2x8x4xf32>
    %37 = vector.shape_cast %36 : vector<2x8x4xf32> to vector<2x32xf32>
    %c0_18 = arith.constant 0 : index
    %c0_19 = arith.constant 0 : index
    %38 = vector.load %arg13[%c0_18, %c0_19] : memref<2x32xf32, #tpu.memory_space<vmem>>, vector<2x32xf32>
    tpu.vector_store %arg13[%c0_18, %c0_19], %37 {strides = array<i32>} : memref<2x32xf32, #tpu.memory_space<vmem>>, vector<2x32xf32>,
    %39 = vector.extract_strided_slice %6 {offsets = [0, 0], sizes = [2, 32], strides = [1, 1]} : vector<2x128xf32> to vector<2x32xf32>
    %40 = arith.negf %39 : vector<2x32xf32>
    %41 = math.exp %40 : vector<2x32xf32>
    %cst_20 = arith.constant 1.000000e+00 : f32
    %42 = vector.broadcast %cst_20 : f32 to vector<2x32xf32>
    %43 = arith.addf %42, %41 : vector<2x32xf32>
    %44 = arith.divf %42, %43 : vector<2x32xf32>
    %45 = vector.extract_strided_slice %6 {offsets = [0, 32], sizes = [2, 32], strides = [1, 1]} : vector<2x128xf32> to vector<2x32xf32>
    %46 = arith.negf %45 : vector<2x32xf32>
    %47 = math.exp %46 : vector<2x32xf32>
    %cst_21 = arith.constant 1.000000e+00 : f32
    %48 = vector.broadcast %cst_21 : f32 to vector<2x32xf32>
    %49 = arith.addf %48, %47 : vector<2x32xf32>
    %50 = arith.divf %48, %49 : vector<2x32xf32>
    %51 = vector.extract_strided_slice %6 {offsets = [0, 64], sizes = [2, 32], strides = [1, 1]} : vector<2x128xf32> to vector<2x32xf32>
    %52 = math.tanh %51 : vector<2x32xf32>
    %53 = vector.extract_strided_slice %6 {offsets = [0, 96], sizes = [2, 32], strides = [1, 1]} : vector<2x128xf32> to vector<2x32xf32>
    %54 = arith.negf %53 : vector<2x32xf32>
    %55 = math.exp %54 : vector<2x32xf32>
    %cst_22 = arith.constant 1.000000e+00 : f32
    %56 = vector.broadcast %cst_22 : f32 to vector<2x32xf32>
    %57 = arith.addf %56, %55 : vector<2x32xf32>
    %58 = arith.divf %56, %57 : vector<2x32xf32>
    %c0_23 = arith.constant 0 : index
    %c0_24 = arith.constant 0 : index
    %59 = vector.load %arg1[%c0_23, %c0_24] : memref<2x32xf32, #tpu.memory_space<vmem>>, vector<2x32xf32>
    %60 = arith.mulf %50, %59 : vector<2x32xf32>
    %61 = arith.mulf %44, %52 : vector<2x32xf32>
    %62 = arith.addf %60, %61 : vector<2x32xf32>
    %63 = math.tanh %62 : vector<2x32xf32>
    %64 = arith.mulf %58, %63 : vector<2x32xf32>
    %c0_25 = arith.constant 0 : index
    %c0_26 = arith.constant 0 : index
    %65 = vector.load %arg12[%c0_25, %c0_26] : memref<2x32xf32, #tpu.memory_space<vmem>>, vector<2x32xf32>
    tpu.vector_store %arg12[%c0_25, %c0_26], %62 {strides = array<i32>} : memref<2x32xf32, #tpu.memory_space<vmem>>, vector<2x32xf32>,
    %c0_27 = arith.constant 0 : index
    %c0_28 = arith.constant 0 : index
    %66 = vector.load %arg11[%c0_27, %c0_28] : memref<2x32xf32, #tpu.memory_space<vmem>>, vector<2x32xf32>
    tpu.vector_store %arg11[%c0_27, %c0_28], %64 {strides = array<i32>} : memref<2x32xf32, #tpu.memory_space<vmem>>, vector<2x32xf32>,
    %cst_29 = arith.constant dense<0.000000e+00> : vector<2x4x2xf32>
    %67 = tpu.matmul %36, %15, %cst_29 {dimension_numbers = #tpu.dot_dimension_numbers<[1], [1], [2], [2], [0, 0, 0, 2, 1, 2], [0], [0]>} : vector<2x8x4xf32>, vector<2x8x2xf32>, vector<2x4x2xf32> -> vector<2x4x2xf32>
    %c0_30 = arith.constant 0 : index
    %c0_31 = arith.constant 0 : index
    %68 = vector.load %arg8[%c0_30, %c0_31] : memref<32x2xf32, #tpu.memory_space<vmem>>, vector<32x2xf32>
    %cst_32 = arith.constant dense<0.000000e+00> : vector<2x2xf32>
    %69 = tpu.matmul %64, %68, %cst_32 {dimension_numbers = #tpu.dot_dimension_numbers<[1], [0], [0], [1], [0, 0, 1, 1], [], []>} : vector<2x32xf32>, vector<32x2xf32>, vector<2x2xf32> -> vector<2x2xf32>
    %c0_33 = arith.constant 0 : index
    %c0_34 = arith.constant 0 : index
    %70 = vector.load %arg9[%c0_33, %c0_34] : memref<1x2xf32, #tpu.memory_space<vmem>>, vector<1x2xf32>
    %71 = vector.broadcast %70 : vector<1x2xf32> to vector<2x2xf32>
    %72 = arith.addf %69, %71 : vector<2x2xf32>
    %73 = vector.shape_cast %72 : vector<2x2xf32> to vector<2x1x2xf32>
    %74 = vector.broadcast %73 : vector<2x1x2xf32> to vector<2x4x2xf32>
    %75 = arith.addf %67, %74 : vector<2x4x2xf32>
    %76 = vector.shape_cast %75 : vector<2x4x2xf32> to vector<2x8xf32>
    %c0_35 = arith.constant 0 : index
    %c0_36 = arith.constant 0 : index
    %77 = vector.load %arg10[%c0_35, %c0_36] : memref<2x8xf32, #tpu.memory_space<vmem>>, vector<2x8xf32>
    tpu.vector_store %arg10[%c0_35, %c0_36], %76 {strides = array<i32>} : memref<2x8xf32, #tpu.memory_space<vmem>>, vector<2x8xf32>,
    return
  }
}

</mosaic_0001>

<llo_original>
// kernel: tpu_custom_call.1
$region0: #{tpu_custom_call.1}
  #allocation0 [shape = 'u32[]', space=smem, size = 0x4, offset = 0x4, fixed_abs, tag = 'smem constant byte address 0x4 - core index']
  #allocation1 [shape = 'u32[72,128]{1,0:T(1,128)}', space=vmem, size = 0x9000, scoped, tag = 'internal scratch']
  %s0 = inlined_call_operand.vmem [shape: f32[2,40], index: 0, kind: input, shape index: {}]
  %s1 = inlined_call_operand.vmem [shape: f32[2,32], index: 1, kind: input, shape index: {}]
  %s2 = inlined_call_operand.vmem [shape: f32[2,8,32], index: 2, kind: input, shape index: {}]
  %s3 = inlined_call_operand.vmem [shape: f32[8,4], index: 3, kind: input, shape index: {}]
  %s4 = inlined_call_operand.hbm [shape: f32[40,160], index: 4, kind: input, shape index: {}]
  %s5 = inlined_call_operand.vmem [shape: f32[1,160], index: 5, kind: input, shape index: {}]
  %s6 = inlined_call_operand.vmem [shape: f32[32,34], index: 6, kind: input, shape index: {}]
  %s7 = inlined_call_operand.vmem [shape: f32[32,4], index: 7, kind: input, shape index: {}]
  %s8 = inlined_call_operand.vmem [shape: f32[32,2], index: 8, kind: input, shape index: {}]
  %s9 = inlined_call_operand.vmem [shape: f32[1,2], index: 9, kind: input, shape index: {}]
  %s10 = inlined_call_operand.hbm [shape: f32[2,8], index: 10, kind: output, shape index: {0}]
  %s11 = inlined_call_operand.hbm [shape: f32[2,32], index: 11, kind: output, shape index: {1}]
  %s12 = inlined_call_operand.hbm [shape: f32[2,32], index: 12, kind: output, shape index: {2}]
  %s13 = inlined_call_operand.hbm [shape: f32[2,32], index: 13, kind: output, shape index: {3}]
  %14 = xla_tuple %s10, %s11, %s12, %s13
  %s15 = sld [smem:[#allocation0]]
  $region78: #{tpu_custom_call.1} parent=0
    _
  %s17 = ssub.s32 1, %s15
  %s18 = scalar_select 0, %s17, %s15
  $region1: #{tpu_custom_call.1} parent=0
    #allocation2 [shape = 'u8[40960]{0}', space=vmem, size = 0xa000, scoped, tag = 'input window, operand 4, single buffered']
    #allocation3 [shape = 's32[1]{0}', space=sflag, size = 0x4, scoped, tag = 'scoped memory for tpu_custom_call.1']
    #allocation4 [shape = 's32[1]{0}', space=sflag, size = 0x4, scoped, tag = 'scoped memory for tpu_custom_call.1']
    #allocation5 [shape = 'u8[1024]{0}', space=vmem, size = 0x400, scoped, tag = 'output window, operand 0, single buffered']
    #allocation6 [shape = 'u8[1024]{0}', space=vmem, size = 0x400, scoped, tag = 'output window, operand 1, single buffered']
    #allocation7 [shape = 's32[1]{0}', space=sflag, size = 0x4, scoped, tag = 'scoped memory for tpu_custom_call.1']
    #allocation8 [shape = 'u8[1024]{0}', space=vmem, size = 0x400, scoped, tag = 'output window, operand 2, single buffered']
    #allocation9 [shape = 'u8[1024]{0}', space=vmem, size = 0x400, scoped, tag = 'output window, operand 3, single buffered']
    #allocation10 [shape = 's32[1]{0}', space=sflag, size = 0x4, scoped, tag = 'scoped memory for tpu_custom_call.1']
    %19 = vsyncpa [#allocation3], 0
    %20 = vsyncpa [#allocation4], 0
    %21 = vsyncpa [#allocation7], 0
    %22 = vsyncpa [#allocation10], 0
    // Predicated region
    $region2: #{tpu_custom_call.1} parent=1 // pred_check
      _
    $region3: #{tpu_custom_call.1} parent=1 // pred_check_branch
      %24 = sbr.rel (0) target = $region5
    $region4: #{tpu_custom_call.1} parent=1 // pred_region
      _
    $region5: #{tpu_custom_call.1} parent=1 // pred_fallthru
      _
    // Predicated region
    $region6: #{tpu_custom_call.1} parent=1 // pred_check
      _
    $region7: #{tpu_custom_call.1} parent=1 // pred_check_branch
      %26 = sbr.rel (0) target = $region9
    $region8: #{tpu_custom_call.1} parent=1 // pred_region
      _
    $region9: #{tpu_custom_call.1} parent=1 // pred_fallthru
      _
    // Predicated region
    $region10: #{tpu_custom_call.1} parent=1 // pred_check
      _
    $region11: #{tpu_custom_call.1} parent=1 // pred_check_branch
      %28 = sbr.rel (0) target = $region13
    $region12: #{tpu_custom_call.1} parent=1 // pred_region
      _
    $region13: #{tpu_custom_call.1} parent=1 // pred_fallthru
      _
    // Predicated region
    $region14: #{tpu_custom_call.1} parent=1 // pred_check
      _
    $region15: #{tpu_custom_call.1} parent=1 // pred_check_branch
      %30 = sbr.rel (0) target = $region17
    $region16: #{tpu_custom_call.1} parent=1 // pred_region
      _
    $region17: #{tpu_custom_call.1} parent=1 // pred_fallthru
      _
    // Predicated region
    $region18: #{tpu_custom_call.1} parent=1 // pred_check
      _
    $region19: #{tpu_custom_call.1} parent=1 // pred_check_branch
      %32 = sbr.rel (0) target = $region21
    $region20: #{tpu_custom_call.1} parent=1 // pred_region
      %34 = vsyncadd [#allocation3], 0
      %s35 = sshll.u32 %s4, 4
      %s36 = int_to_ptr.hbm [resolvable:$true] %s35
      %s37 = sshll.u32 [#allocation2], 4
      %s38 = int_to_ptr.vmem [resolvable:$true] %s37
      %43 = dma.hbm_to_vmem [thread:$0]  %s36, 1280, %s38, [#allocation3], 256, 256, 16
    $region21: #{tpu_custom_call.1} parent=1 // pred_fallthru
      _
    // Predicated region
    $region22: #{tpu_custom_call.1} parent=1 // pred_check
      _
    $region23: #{tpu_custom_call.1} parent=1 // pred_check_branch
      %45 = sbr.rel (0) target = $region25
    $region24: #{tpu_custom_call.1} parent=1 // pred_region
      _
    $region25: #{tpu_custom_call.1} parent=1 // pred_fallthru
      _
    // Predicated region
    $region26: #{tpu_custom_call.1} parent=1 // pred_check
      _
    $region27: #{tpu_custom_call.1} parent=1 // pred_check_branch
      %47 = sbr.rel (0) target = $region29
    $region28: #{tpu_custom_call.1} parent=1 // pred_region
      _
    $region29: #{tpu_custom_call.1} parent=1 // pred_fallthru
      _
    // Predicated region
    $region30: #{tpu_custom_call.1} parent=1 // pred_check
      _
    $region31: #{tpu_custom_call.1} parent=1 // pred_check_branch
      %49 = sbr.rel (0) target = $region33
    $region32: #{tpu_custom_call.1} parent=1 // pred_region
      _
    $region33: #{tpu_custom_call.1} parent=1 // pred_fallthru
      _
    // Predicated region
    $region34: #{tpu_custom_call.1} parent=1 // pred_check
      _
    $region35: #{tpu_custom_call.1} parent=1 // pred_check_branch
      %51 = sbr.rel (0) target = $region37
    $region36: #{tpu_custom_call.1} parent=1 // pred_region
      _
    $region37: #{tpu_custom_call.1} parent=1 // pred_fallthru
      _
    // Predicated region
    $region38: #{tpu_custom_call.1} parent=1 // pred_check
      _
    $region39: #{tpu_custom_call.1} parent=1 // pred_check_branch
      %53 = sbr.rel (0) target = $region41
    $region40: #{tpu_custom_call.1} parent=1 // pred_region
      _
    $region41: #{tpu_custom_call.1} parent=1 // pred_fallthru
      _
    // Predicated region
    $region42: #{tpu_custom_call.1} parent=1 // pred_check
      _
    $region43: #{tpu_custom_call.1} parent=1 // pred_check_branch
      %55 = sbr.rel (0) target = $region45
    $region44: #{tpu_custom_call.1} parent=1 // pred_region
      %57 = dma.done [#allocation3], 1280
    $region45: #{tpu_custom_call.1} parent=1 // pred_fallthru
      _
    %v58 = vld [vmem:[%s0] sm:$0x3]
    %v59 = vld [vmem:[#allocation2] sm:$0xff]
    %v60 = vld [vmem:[#allocation2 + $0x8] sm:$0xff]
    %v61 = vld [vmem:[#allocation2 + $0x10] sm:$0xff]
    %v62 = vld [vmem:[#allocation2 + $0x18] sm:$0xff]
    %v63 = vld [vmem:[#allocation2 + $0x20] sm:$0xff]
    %v64 = vld [vmem:[#allocation2 + $0x28] sm:$0xff]
    %v65 = vld [vmem:[#allocation2 + $0x30] sm:$0xff]
    %v66 = vld [vmem:[#allocation2 + $0x38] sm:$0xff]
    %v67 = vld [vmem:[#allocation2 + $0x40] sm:$0xff]
    %v68 = vld [vmem:[#allocation2 + $0x48] sm:$0xff]
    %v69 = vld [vmem:[%s5] sm:$0x3]
    %v71 = vperm.slane %v69, 0
    %v72 = vperm.slane %v69, 1
    %vm75 = vcmask 326656
    %v77 = vsel %vm75, %v58, 0
    %79 = vmatpush.msra.mxu0 0.0
    %80 = vmatpush.msra.mxu0 0.0
    %81 = vmatpush.msra.mxu0 0.0
    %82 = vmatpush.msra.mxu0 0.0
    %83 = vmatpush.msra.mxu0 0.0
    %84 = vmatpush.msra.mxu0 0.0
    %85 = vmatpush.msra.mxu0 0.0
    %86 = vmatpush.msra.mxu0 0.0
    %87 = vmatpush.msra.mxu0 0.0
    %88 = vmatpush.msra.mxu0 0.0
    %89 = vmatpush.msra.mxu0 0.0
    %90 = vmatpush.msra.mxu0 %v67
    %91 = vmatpush.msra.mxu0 %v65
    %92 = vmatpush.msra.mxu0 %v63
    %93 = vmatpush.msra.mxu0 %v61
    %94 = vmatpush.msra.mxu0 %v59
    %95 = vmatmul.f32.gmra.mxu0 %v77
    %v96 = vpop.f32.mrf.mxu0
    %v97 = vadd.f32 %v71, %v96
    %98 = vdwg.mxu0
    %99 = vmatpush.msra.mxu0 0.0
    %100 = vmatpush.msra.mxu0 0.0
    %101 = vmatpush.msra.mxu0 0.0
    %102 = vmatpush.msra.mxu0 0.0
    %103 = vmatpush.msra.mxu0 0.0
    %104 = vmatpush.msra.mxu0 0.0
    %105 = vmatpush.msra.mxu0 0.0
    %106 = vmatpush.msra.mxu0 0.0
    %107 = vmatpush.msra.mxu0 0.0
    %108 = vmatpush.msra.mxu0 0.0
    %109 = vmatpush.msra.mxu0 0.0
    %110 = vmatpush.msra.mxu0 %v68
    %111 = vmatpush.msra.mxu0 %v66
    %112 = vmatpush.msra.mxu0 %v64
    %113 = vmatpush.msra.mxu0 %v62
    %114 = vmatpush.msra.mxu0 %v60
    %115 = vmatmul.f32.gmra.mxu0 %v77
    %v116 = vpop.f32.mrf.mxu0
    %v117 = vadd.f32 %v72, %v116
    %118 = vdwg.mxu0
    %v119 = vld [vmem:[%s2] sm:$0xff]
    %v120 = vld [vmem:[%s2 + $0x8] sm:$0xff]
    %v121 = vld [vmem:[%s6] sm:$0xff]
    %v122 = vld [vmem:[%s6 + $0x8] sm:$0xff]
    %v123 = vld [vmem:[%s6 + $0x10] sm:$0xff]
    %v124 = vld [vmem:[%s6 + $0x18] sm:$0xff]
    %vm125 = vcmask 261120
    %v127 = vsel %vm125, %v119, 0
    %v130 = vsel %vm125, %v120, 0
    %132 = vmatpush.msra.mxu0 0.0
    %133 = vmatpush.msra.mxu0 0.0
    %134 = vmatpush.msra.mxu0 0.0
    %135 = vmatpush.msra.mxu0 0.0
    %136 = vmatpush.msra.mxu0 0.0
    %137 = vmatpush.msra.mxu0 0.0
    %138 = vmatpush.msra.mxu0 0.0
    %139 = vmatpush.msra.mxu0 0.0
    %140 = vmatpush.msra.mxu0 0.0
    %141 = vmatpush.msra.mxu0 0.0
    %142 = vmatpush.msra.mxu0 0.0
    %143 = vmatpush.msra.mxu0 0.0
    %144 = vmatpush.msra.mxu0 %v124
    %145 = vmatpush.msra.mxu0 %v123
    %146 = vmatpush.msra.mxu0 %v122
    %147 = vmatpush.msra.mxu0 %v121
    %148 = vmatmul.f32.gmra.mxu0 %v127
    %v149 = vpop.f32.mrf.mxu0
    %v150 = vadd.f32 0.0, %v149
    %151 = vmatmul.f32.gmra.mxu0 %v130
    %v152 = vpop.f32.mrf.mxu0
    %v153 = vadd.f32 0.0, %v152
    %154 = vdwg.mxu0
    %v156 = vrot.slane %v117, 1
    %v157 = vperm.slane %v117, 0
    %v158 = vperm.slane %v156, 0
    %v161 = vadd.f32 %v157, %v150
    %v162 = vadd.f32 %v158, %v153
    %v163 = vtanh.pop %v161
    %v164 = vtanh.pop %v162
    %v165 = vld [vmem:[%s7] sm:$0xff]
    %v166 = vld [vmem:[%s7 + $0x8] sm:$0xff]
    %v167 = vld [vmem:[%s7 + $0x10] sm:$0xff]
    %v168 = vld [vmem:[%s7 + $0x18] sm:$0xff]
    %v170 = vsel %vm125, %v163, 0
    %v173 = vsel %vm125, %v164, 0
    %175 = vmatpush.msra.mxu0 0.0
    %176 = vmatpush.msra.mxu0 0.0
    %177 = vmatpush.msra.mxu0 0.0
    %178 = vmatpush.msra.mxu0 0.0
    %179 = vmatpush.msra.mxu0 0.0
    %180 = vmatpush.msra.mxu0 0.0
    %181 = vmatpush.msra.mxu0 0.0
    %182 = vmatpush.msra.mxu0 0.0
    %183 = vmatpush.msra.mxu0 0.0
    %184 = vmatpush.msra.mxu0 0.0
    %185 = vmatpush.msra.mxu0 0.0
    %186 = vmatpush.msra.mxu0 0.0
    %187 = vmatpush.msra.mxu0 %v168
    %188 = vmatpush.msra.mxu0 %v167
    %189 = vmatpush.msra.mxu0 %v166
    %190 = vmatpush.msra.mxu0 %v165
    %191 = vmatmul.f32.gmra.mxu0 %v170
    %v192 = vpop.f32.mrf.mxu0
    %v193 = vadd.f32 0.0, %v192
    %194 = vmatmul.f32.gmra.mxu0 %v173
    %v195 = vpop.f32.mrf.mxu0
    %v196 = vadd.f32 0.0, %v195
    %197 = vdwg.mxu0
    %v198 = vld [vmem:[%s3] sm:$0xff]
    %v199 = vsub.f32 %v193, %v198
    %v200 = vsub.f32 %v196, %v198
    %vm201 = vcmask 31744
    %v202 = vsel %vm201, %v199, -inf
    %v203 = vrot.slane %v202, 4
    %v204 = vmax.f32 %v202, %v203
    %v205 = vrot.slane %v204, 2
    %v206 = vmax.f32 %v204, %v205
    %v207 = vrot.slane %v206, 1
    %v208 = vmax.f32 %v206, %v207
    %v209 = vsel %vm201, %v200, -inf
    %v210 = vrot.slane %v209, 4
    %v211 = vmax.f32 %v209, %v210
    %v212 = vrot.slane %v211, 2
    %v213 = vmax.f32 %v211, %v212
    %v214 = vrot.slane %v213, 1
    %v215 = vmax.f32 %v213, %v214
    %v216 = vsub.f32 %v199, %v208
    %v217 = vsub.f32 %v200, %v215
    %v218 = vmul.f32 %v216, 1.442695
    %v219 = vpow.pop %v218
    %v220 = vmul.f32 %v217, 1.442695
    %v221 = vpow.pop %v220
    %v222 = vsel %vm201, %v219, 0.0
    %v223 = vrot.slane %v222, 4
    %v224 = vadd.f32 %v222, %v223
    %v225 = vrot.slane %v224, 2
    %v226 = vadd.f32 %v224, %v225
    %v227 = vrot.slane %v226, 1
    %v228 = vadd.f32 %v226, %v227
    %v229 = vsel %vm201, %v221, 0.0
    %v230 = vrot.slane %v229, 4
    %v231 = vadd.f32 %v229, %v230
    %v232 = vrot.slane %v231, 2
    %v233 = vadd.f32 %v231, %v232
    %v234 = vrot.slane %v233, 1
    %v235 = vadd.f32 %v233, %v234
    %v236 = vrcp.pop %v228
    %v237 = vmul.f32 %v228, %v236
    %v238 = vsub.f32 1.0, %v237
    %v239 = vmul.f32 %v236, %v238
    %v240 = vadd.f32 %v236, %v239
    %vm241 = vweird.f32 %v228
    %vm242 = vweird.f32 %v236
    %vm243 = vmor %vm241, %vm242
    %v244 = vsel %vm243, %v236, %v240
    %v245 = vand.u32 2147483647, %v228
    %vm246 = vcmp.eq.f32.partialorder %v245, 8.507059e+37
    %v247 = vand.u32 %v228, 2147483648
    %v248 = vor.u32 1.1754944e-38, %v247
    %v249 = vsel %vm246, %v248, %v244
    %v250 = vmul.f32 %v219, %v249
    %v251 = vrcp.pop %v235
    %v252 = vmul.f32 %v235, %v251
    %v253 = vsub.f32 1.0, %v252
    %v254 = vmul.f32 %v251, %v253
    %v255 = vadd.f32 %v251, %v254
    %vm256 = vweird.f32 %v235
    %vm257 = vweird.f32 %v251
    %vm258 = vmor %vm256, %vm257
    %v259 = vsel %vm258, %v251, %v255
    %v260 = vand.u32 2147483647, %v235
    %vm261 = vcmp.eq.f32.partialorder %v260, 8.507059e+37
    %v262 = vand.u32 %v235, 2147483648
    %v263 = vor.u32 1.1754944e-38, %v262
    %v264 = vsel %vm261, %v263, %v259
    %v265 = vmul.f32 %v221, %v264
    %v266 = vrot.slane %v250, 4
    %vm267 = vcmask 1047556
    %v268 = vsel %vm267, 0.0, %v266
    %v270 = vunpack.c.l.s4 1983009808
    %v271 = vunpack.c.0.s8 %v270
    %v272 = vperm.slane %v250, %v271
    %v274 = vunpack.c.l.s4 1983009808
    %v275 = vunpack.c.0.s8 %v274
    %v276 = vperm.slane %v268, %v275
    %v277 = vrot.slane %v265, 4
    %v278 = vsel %vm267, 0.0, %v277
    %v280 = vunpack.c.l.s4 1983009808
    %v281 = vunpack.c.0.s8 %v280
    %v282 = vperm.slane %v265, %v281
    %v284 = vunpack.c.l.s4 1983009808
    %v285 = vunpack.c.0.s8 %v284
    %v286 = vperm.slane %v278, %v285
    %v287 = vrot.slane %v282, 4
    %v288 = vsel %vm267, %v287, %v272
    %v289 = vrot.slane %v272, 4
    %v290 = vsel %vm267, %v282, %v289
    %v292 = vunpack.c.l.s4 1934713408
    %v293 = vunpack.c.0.s8 %v292
    %v294 = vperm.slane %v288, %v293
    %v296 = vunpack.c.l.s4 1934713408
    %v297 = vunpack.c.0.s8 %v296
    %v298 = vperm.slane %v290, %v297
    %v299 = vrot.slane %v286, 4
    %v300 = vsel %vm267, %v299, %v276
    %v301 = vrot.slane %v276, 4
    %v302 = vsel %vm267, %v286, %v301
    %v304 = vunpack.c.l.s4 1934713408
    %v305 = vunpack.c.0.s8 %v304
    %v306 = vperm.slane %v300, %v305
    %v308 = vunpack.c.l.s4 1934713408
    %v309 = vunpack.c.0.s8 %v308
    %v310 = vperm.slane %v302, %v309
    %v311 = vrot.slane %v294, 4
    %v312 = vsel %vm267, 0.0, %v311
    %v313 = vrot.slane %v298, 4
    %v314 = vsel %vm267, 0.0, %v313
    %v315 = vrot.slane %v306, 4
    %v316 = vsel %vm267, 0.0, %v315
    %v317 = vrot.slane %v310, 4
    %v318 = vsel %vm267, 0.0, %v317
    %320 = vrot.lane.b32.xlu0 %v312, 4
    %v321 = vpop.permute.xlu0 %320
    %324 = vrot.lane.b32.xlu0 %v298, 8
    %v325 = vpop.permute.xlu0 %324
    %328 = vrot.lane.b32.xlu0 %v314, 12
    %v329 = vpop.permute.xlu0 %328
    %332 = vrot.lane.b32.xlu0 %v306, 16
    %v333 = vpop.permute.xlu0 %332
    %336 = vrot.lane.b32.xlu0 %v316, 20
    %v337 = vpop.permute.xlu0 %336
    %340 = vrot.lane.b32.xlu0 %v310, 24
    %v341 = vpop.permute.xlu0 %340
    %344 = vrot.lane.b32.xlu0 %v318, 28
    %v345 = vpop.permute.xlu0 %344
    %v347 = vsel %vm201, %v294, %v321
    %vm348 = vcmask 64512
    %v349 = vsel %vm348, %v347, %v325
    %vm350 = vcmask 97280
    %v351 = vsel %vm350, %v349, %v329
    %vm352 = vcmask 130048
    %v353 = vsel %vm352, %v351, %v333
    %vm354 = vcmask 162816
    %v355 = vsel %vm354, %v353, %v337
    %vm356 = vcmask 195584
    %v357 = vsel %vm356, %v355, %v341
    %vm358 = vcmask 228352
    %v359 = vsel %vm358, %v357, %v345
    %vm360 = vcmask 254976
    %361 = vst.msk [vmem:[#allocation9] sm:$0x3] %vm360, %v359
    %v362 = vxor.u32 %v97, 2147483648
    %v363 = vmul.f32 %v362, 1.442695
    %v364 = vpow.pop %v363
    %v365 = vadd.f32 %v364, 1.0
    %v366 = vrcp.pop %v365
    %v367 = vmul.f32 %v365, %v366
    %v368 = vsub.f32 1.0, %v367
    %v369 = vmul.f32 %v366, %v368
    %v370 = vadd.f32 %v366, %v369
    %vm371 = vweird.f32 %v365
    %vm372 = vweird.f32 %v366
    %vm373 = vmor %vm371, %vm372
    %v374 = vsel %vm373, %v366, %v370
    %v375 = vand.u32 2147483647, %v365
    %vm376 = vcmp.eq.f32.partialorder %v375, 8.507059e+37
    %v377 = vand.u32 %v365, 2147483648
    %v378 = vor.u32 1.1754944e-38, %v377
    %v379 = vsel %vm376, %v378, %v374
    %v380 = vmul.f32 1.0, %v379
    %v381 = vtanh.pop %v97
    %v382 = vld [vmem:[%s1] sm:$0x3]
    %384 = vrot.lane.b32.xlu0 %v382, 32
    %v385 = vpop.permute.xlu0 %384
    %v387 = vmul.f32 %v380, %v385
    %389 = vrot.lane.b32.xlu0 %v381, 64
    %v390 = vpop.permute.xlu0 %389
    %v392 = vmul.f32 %v380, %v390
    %394 = vrot.lane.b32.xlu0 %v392, 32
    %v395 = vpop.permute.xlu0 %394
    %v397 = vadd.f32 %v387, %v395
    %v398 = vtanh.pop %v397
    %400 = vrot.lane.b32.xlu0 %v398, 64
    %v401 = vpop.permute.xlu0 %400
    %v403 = vmul.f32 %v380, %v401
    %405 = vrot.lane.b32.xlu0 %v397, 96
    %v406 = vpop.permute.xlu0 %405
    %408 = vst.msk [vmem:[#allocation8] sm:$0x3] %vm360, %v406
    %410 = vrot.lane.b32.xlu0 %v403, 32
    %v411 = vpop.permute.xlu0 %410
    %413 = vst.msk [vmem:[#allocation6] sm:$0x3] %vm360, %v411
    %v414 = vld [vmem:[%s8] sm:$0xff]
    %v415 = vld [vmem:[%s8 + $0x8] sm:$0xff]
    %v416 = vld [vmem:[%s8 + $0x10] sm:$0xff]
    %v417 = vld [vmem:[%s8 + $0x18] sm:$0xff]
    %v418 = vld [vmem:[%s9] sm:$0x1]
    %v420 = vperm.slane %v418, 0
    %v422 = vsel %vm125, %v411, 0
    %424 = vmatpush.msra.mxu0 0.0
    %425 = vmatpush.msra.mxu0 0.0
    %426 = vmatpush.msra.mxu0 0.0
    %427 = vmatpush.msra.mxu0 0.0
    %428 = vmatpush.msra.mxu0 0.0
    %429 = vmatpush.msra.mxu0 0.0
    %430 = vmatpush.msra.mxu0 0.0
    %431 = vmatpush.msra.mxu0 0.0
    %432 = vmatpush.msra.mxu0 0.0
    %433 = vmatpush.msra.mxu0 0.0
    %434 = vmatpush.msra.mxu0 0.0
    %435 = vmatpush.msra.mxu0 0.0
    %436 = vmatpush.msra.mxu0 %v417
    %437 = vmatpush.msra.mxu0 %v416
    %438 = vmatpush.msra.mxu0 %v415
    %439 = vmatpush.msra.mxu0 %v414
    %440 = vmatmul.f32.gmra.mxu0 %v422
    %v441 = vpop.f32.mrf.mxu0
    %v442 = vadd.f32 %v420, %v441
    %443 = vdwg.mxu0
    %v445 = vrot.slane %v442, 1
    %v446 = vperm.slane %v442, 0
    %v447 = vperm.slane %v445, 0
    %450 = vxpose.xlu0.b32.start [1/16] %v250, 128
    %451 = vxpose.xlu0.b32.cont [2/16] 0.0, 128
    %452 = vxpose.xlu0.b32.cont [3/16] 0.0, 128
    %453 = vxpose.xlu0.b32.cont [4/16] 0.0, 128
    %454 = vxpose.xlu0.b32.cont [5/16] 0.0, 128
    %455 = vxpose.xlu0.b32.cont [6/16] 0.0, 128
    %456 = vxpose.xlu0.b32.cont [7/16] 0.0, 128
    %457 = vxpose.xlu0.b32.cont [8/16] 0.0, 128
    %458 = vxpose.xlu0.b32.cont [9/16] 0.0, 128
    %459 = vxpose.xlu0.b32.cont [10/16] 0.0, 128
    %460 = vxpose.xlu0.b32.cont [11/16] 0.0, 128
    %461 = vxpose.xlu0.b32.cont [12/16] 0.0, 128
    %462 = vxpose.xlu0.b32.cont [13/16] 0.0, 128
    %463 = vxpose.xlu0.b32.cont [14/16] 0.0, 128
    %464 = vxpose.xlu0.b32.cont [15/16] 0.0, 128
    %465 = vxpose.xlu0.b32.end [16/16] 0.0, 128
    %v466 = vpop.trf.xlu0
    %v467 = vpop.trf.xlu0
    %v468 = vpop.trf.xlu0
    %v469 = vpop.trf.xlu0
    %v470 = vpop.trf.xlu0
    %v471 = vpop.trf.xlu0
    %v472 = vpop.trf.xlu0
    %v473 = vpop.trf.xlu0
    %v474 = vpop.trf.xlu0
    %v475 = vpop.trf.xlu0
    %v476 = vpop.trf.xlu0
    %v477 = vpop.trf.xlu0
    %v478 = vpop.trf.xlu0
    %v479 = vpop.trf.xlu0
    %v480 = vpop.trf.xlu0
    %v481 = vpop.trf.xlu0
    %483 = vrot.lane.b32.xlu0 %v150, 96
    %v484 = vpop.permute.xlu0 %483
    %v487 = vsel %vm348, %v466, 0
    %489 = vmatpush.msra.mxu0 0.0
    %490 = vmatpush.msra.mxu0 0.0
    %491 = vmatpush.msra.mxu0 0.0
    %492 = vmatpush.msra.mxu0 0.0
    %493 = vmatpush.msra.mxu0 0.0
    %494 = vmatpush.msra.mxu0 0.0
    %495 = vmatpush.msra.mxu0 0.0
    %496 = vmatpush.msra.mxu0 0.0
    %497 = vmatpush.msra.mxu0 0.0
    %498 = vmatpush.msra.mxu0 0.0
    %499 = vmatpush.msra.mxu0 0.0
    %500 = vmatpush.msra.mxu0 0.0
    %501 = vmatpush.msra.mxu0 0.0
    %502 = vmatpush.msra.mxu0 0.0
    %503 = vmatpush.msra.mxu0 0.0
    %504 = vmatpush.msra.mxu0 %v484
    %505 = vmatmul.f32.gmra.mxu0 %v487
    %v506 = vpop.f32.mrf.mxu0
    %v507 = vadd.f32 %v446, %v506
    %508 = vdwg.mxu0
    %509 = vxpose.xlu0.b32.start [1/16] %v265, 128
    %510 = vxpose.xlu0.b32.cont [2/16] 0.0, 128
    %511 = vxpose.xlu0.b32.cont [3/16] 0.0, 128
    %512 = vxpose.xlu0.b32.cont [4/16] 0.0, 128
    %513 = vxpose.xlu0.b32.cont [5/16] 0.0, 128
    %514 = vxpose.xlu0.b32.cont [6/16] 0.0, 128
    %515 = vxpose.xlu0.b32.cont [7/16] 0.0, 128
    %516 = vxpose.xlu0.b32.cont [8/16] 0.0, 128
    %517 = vxpose.xlu0.b32.cont [9/16] 0.0, 128
    %518 = vxpose.xlu0.b32.cont [10/16] 0.0, 128
    %519 = vxpose.xlu0.b32.cont [11/16] 0.0, 128
    %520 = vxpose.xlu0.b32.cont [12/16] 0.0, 128
    %521 = vxpose.xlu0.b32.cont [13/16] 0.0, 128
    %522 = vxpose.xlu0.b32.cont [14/16] 0.0, 128
    %523 = vxpose.xlu0.b32.cont [15/16] 0.0, 128
    %524 = vxpose.xlu0.b32.end [16/16] 0.0, 128
    %v525 = vpop.trf.xlu0
    %v526 = vpop.trf.xlu0
    %v527 = vpop.trf.xlu0
    %v528 = vpop.trf.xlu0
    %v529 = vpop.trf.xlu0
    %v530 = vpop.trf.xlu0
    %v531 = vpop.trf.xlu0
    %v532 = vpop.trf.xlu0
    %v533 = vpop.trf.xlu0
    %v534 = vpop.trf.xlu0
    %v535 = vpop.trf.xlu0
    %v536 = vpop.trf.xlu0
    %v537 = vpop.trf.xlu0
    %v538 = vpop.trf.xlu0
    %v539 = vpop.trf.xlu0
    %v540 = vpop.trf.xlu0
    %542 = vrot.lane.b32.xlu0 %v153, 96
    %v543 = vpop.permute.xlu0 %542
    %v546 = vsel %vm348, %v525, 0
    %548 = vmatpush.msra.mxu0 0.0
    %549 = vmatpush.msra.mxu0 0.0
    %550 = vmatpush.msra.mxu0 0.0
    %551 = vmatpush.msra.mxu0 0.0
    %552 = vmatpush.msra.mxu0 0.0
    %553 = vmatpush.msra.mxu0 0.0
    %554 = vmatpush.msra.mxu0 0.0
    %555 = vmatpush.msra.mxu0 0.0
    %556 = vmatpush.msra.mxu0 0.0
    %557 = vmatpush.msra.mxu0 0.0
    %558 = vmatpush.msra.mxu0 0.0
    %559 = vmatpush.msra.mxu0 0.0
    %560 = vmatpush.msra.mxu0 0.0
    %561 = vmatpush.msra.mxu0 0.0
    %562 = vmatpush.msra.mxu0 0.0
    %563 = vmatpush.msra.mxu0 %v543
    %564 = vmatmul.f32.gmra.mxu0 %v546
    %v565 = vpop.f32.mrf.mxu0
    %v566 = vadd.f32 %v447, %v565
    %567 = vdwg.mxu0
    %v569 = vunpack.c.l.s4 1983009808
    %v570 = vunpack.c.0.s8 %v569
    %v571 = vperm.slane %v507, %v570
    %v573 = vunpack.c.l.s4 1983009808
    %v574 = vunpack.c.0.s8 %v573
    %v575 = vperm.slane %v566, %v574
    %v576 = vrot.slane %v575, 4
    %v577 = vsel %vm267, %v576, %v571
    %v578 = vrot.slane %v571, 4
    %v579 = vsel %vm267, %v575, %v578
    %v581 = vunpack.c.l.s4 1934713408
    %v582 = vunpack.c.0.s8 %v581
    %v583 = vperm.slane %v577, %v582
    %v585 = vunpack.c.l.s4 1934713408
    %v586 = vunpack.c.0.s8 %v585
    %v587 = vperm.slane %v579, %v586
    %v588 = vrot.slane %v583, 4
    %v589 = vsel %vm267, 0.0, %v588
    %v590 = vrot.slane %v587, 4
    %v591 = vsel %vm267, 0.0, %v590
    %593 = vrot.lane.b32.xlu0 %v589, 2
    %v594 = vpop.permute.xlu0 %593
    %597 = vrot.lane.b32.xlu0 %v587, 4
    %v598 = vpop.permute.xlu0 %597
    %601 = vrot.lane.b32.xlu0 %v591, 6
    %v602 = vpop.permute.xlu0 %601
    %vm604 = vcmask 15360
    %v605 = vsel %vm604, %v583, %v594
    %v606 = vsel %vm201, %v605, %v598
    %vm607 = vcmask 48128
    %v608 = vsel %vm607, %v606, %v602
    %vm609 = vcmask 58368
    %610 = vst.msk [vmem:[#allocation5] sm:$0x3] %vm609, %v608
    // Predicated region
    $region46: #{tpu_custom_call.1} parent=1 // pred_check
      _
    $region47: #{tpu_custom_call.1} parent=1 // pred_check_branch
      %612 = sbr.rel (0) target = $region49
    $region48: #{tpu_custom_call.1} parent=1 // pred_region
      %614 = vsyncadd [#allocation4], 0
      %s616 = sshll.u32 [#allocation5], 4
      %s617 = int_to_ptr.vmem [resolvable:$true] %s616
      %s618 = sshll.u32 %s10, 4
      %s619 = int_to_ptr.hbm [resolvable:$true] %s618
      %621 = dma.vmem_to_hbm [thread:$0]  %s617, 32, %s619, [#allocation4]
    $region49: #{tpu_custom_call.1} parent=1 // pred_fallthru
      _
    // Predicated region
    $region50: #{tpu_custom_call.1} parent=1 // pred_check
      _
    $region51: #{tpu_custom_call.1} parent=1 // pred_check_branch
      %623 = sbr.rel (0) target = $region53
    $region52: #{tpu_custom_call.1} parent=1 // pred_region
      %625 = vsyncadd [#allocation7], 0
      %s627 = sshll.u32 [#allocation6], 4
      %s628 = int_to_ptr.vmem [resolvable:$true] %s627
      %s629 = sshll.u32 %s11, 4
      %s630 = int_to_ptr.hbm [resolvable:$true] %s629
      %632 = dma.vmem_to_hbm [thread:$0]  %s628, 32, %s630, [#allocation7]
    $region53: #{tpu_custom_call.1} parent=1 // pred_fallthru
      _
    // Predicated region
    $region54: #{tpu_custom_call.1} parent=1 // pred_check
      _
    $region55: #{tpu_custom_call.1} parent=1 // pred_check_branch
      %634 = sbr.rel (0) target = $region57
    $region56: #{tpu_custom_call.1} parent=1 // pred_region
      %636 = vsyncadd [#allocation7], 0
      %s638 = sshll.u32 [#allocation8], 4
      %s639 = int_to_ptr.vmem [resolvable:$true] %s638
      %s640 = sshll.u32 %s12, 4
      %s641 = int_to_ptr.hbm [resolvable:$true] %s640
      %643 = dma.vmem_to_hbm [thread:$0]  %s639, 32, %s641, [#allocation7]
    $region57: #{tpu_custom_call.1} parent=1 // pred_fallthru
      _
    // Predicated region
    $region58: #{tpu_custom_call.1} parent=1 // pred_check
      _
    $region59: #{tpu_custom_call.1} parent=1 // pred_check_branch
      %645 = sbr.rel (0) target = $region61
    $region60: #{tpu_custom_call.1} parent=1 // pred_region
      %647 = vsyncadd [#allocation10], 0
      %s649 = sshll.u32 [#allocation9], 4
      %s650 = int_to_ptr.vmem [resolvable:$true] %s649
      %s651 = sshll.u32 %s13, 4
      %s652 = int_to_ptr.hbm [resolvable:$true] %s651
      %654 = dma.vmem_to_hbm [thread:$0]  %s650, 32, %s652, [#allocation10]
    $region61: #{tpu_custom_call.1} parent=1 // pred_fallthru
      _
    // Predicated region
    $region62: #{tpu_custom_call.1} parent=1 // pred_check
      _
    $region63: #{tpu_custom_call.1} parent=1 // pred_check_branch
      %656 = sbr.rel (0) target = $region65
    $region64: #{tpu_custom_call.1} parent=1 // pred_region
      %658 = dma.done [#allocation4], 32
    $region65: #{tpu_custom_call.1} parent=1 // pred_fallthru
      _
    // Predicated region
    $region66: #{tpu_custom_call.1} parent=1 // pred_check
      _
    $region67: #{tpu_custom_call.1} parent=1 // pred_check_branch
      %660 = sbr.rel (0) target = $region69
    $region68: #{tpu_custom_call.1} parent=1 // pred_region
      %662 = dma.done [#allocation7], 32
    $region69: #{tpu_custom_call.1} parent=1 // pred_fallthru
      _
    // Predicated region
    $region70: #{tpu_custom_call.1} parent=1 // pred_check
      _
    $region71: #{tpu_custom_call.1} parent=1 // pred_check_branch
      %664 = sbr.rel (0) target = $region73
    $region72: #{tpu_custom_call.1} parent=1 // pred_region
      %666 = dma.done [#allocation7], 32
    $region73: #{tpu_custom_call.1} parent=1 // pred_fallthru
      _
    // Predicated region
    $region74: #{tpu_custom_call.1} parent=1 // pred_check
      _
    $region75: #{tpu_custom_call.1} parent=1 // pred_check_branch
      %668 = sbr.rel (0) target = $region77
    $region76: #{tpu_custom_call.1} parent=1 // pred_region
      %670 = dma.done [#allocation10], 32
    $region77: #{tpu_custom_call.1} parent=1 // pred_fallthru
      _
    %671 = vsyncpa [#allocation3], 1
    %672 = vsyncpa [#allocation4], 1
    %673 = vsyncpa [#allocation7], 1
    %674 = vsyncpa [#allocation10], 1

</llo_original>
